<compile_context>
chip_gen: v5e
topology: v5e:2x2
jax: 0.10.0
libtpu: 0.0.40
codegen_flags: <defaults>
</compile_context>

<pallas_src>
import functools

import jax
import jax.numpy as jnp
from jax.experimental import pallas as pl
from jax.experimental.pallas import tpu as pltpu


def se_block_kernel(x_ref, wd_ref, bd_ref, wu_ref, bu_ref, o_ref, pooled_ref,
                    *, rows_per_chunk):
    # x_ref / o_ref: (TN, C, HW).  Weights are full (untiled) blocks:
    #   wd_ref (C, internal), bd_ref (1, internal),
    #   wu_ref (internal, C), bu_ref (1, C).
    # pooled_ref: (TN, C) f32 scratch for the pooled activations.
    tn, c, hw = x_ref.shape
    inv_hw = 1.0 / hw

    # Global average pool over the spatial (lane) axis with f32 accumulation.
    # Processed in batch-row sub-chunks (static, fully unrolled) so the f32
    # upcast temporary stays small even for bf16 inputs -- no full-slab f32
    # copy ever lives in VMEM.
    r = 0
    while r < tn:
        rr = min(rows_per_chunk, tn - r)
        xc = x_ref[r:r + rr, :, :]                                  # (rr, C, HW)
        pooled_ref[r:r + rr, :] = (
            jnp.sum(xc.astype(jnp.float32), axis=-1) * inv_hw)      # (rr, C)
        r += rr
    pooled = pooled_ref[...]                                        # (TN, C) f32

    # down (1x1 conv) + ReLU:  (TN, C) @ (C, internal) + b_down   [f32 accum]
    h = jnp.dot(pooled, wd_ref[...], preferred_element_type=jnp.float32)
    h = jnp.maximum(h + bd_ref[...], 0.0)                           # (TN, internal)

    # up (1x1 conv) + sigmoid: (TN, internal) @ (internal, C) + b_up
    e = jnp.dot(h, wu_ref[...], preferred_element_type=jnp.float32) + bu_ref[...]
    scale = jax.nn.sigmoid(e).astype(x_ref.dtype)                   # (TN, C)

    # Channel-wise gate broadcast over the spatial (lane) axis; single,
    # unmasked, lane-dense store.
    o_ref[...] = x_ref[...] * scale[:, :, None]


def _tpu_config():
    """Best-effort (physical VMEM bytes, TensorCores per chip)."""
    vmem_bytes = None
    kind = ""
    try:
        info = pltpu.get_tpu_info()
        vmem_bytes = getattr(info, "vmem_capacity_bytes", None)
    except Exception:
        vmem_bytes = None
    try:
        kind = jax.devices()[0].device_kind.lower()
    except Exception:
        kind = ""
    two_core = any(tag in kind for tag in ("v7", "tpu7", "7x"))
    num_tc = 2 if two_core else 1
    try:
        vmem_bytes = int(vmem_bytes) if vmem_bytes else None
    except Exception:
        vmem_bytes = None
    if not vmem_bytes or vmem_bytes <= 0:
        # Conservative defaults: 64 MiB if the part looks like (or might be)
        # a v7x-class chip, 128 MiB for known v4/v5e/v6e-class parts.
        vmem_bytes = (64 << 20) if (two_core or not kind) else (128 << 20)
    return vmem_bytes, num_tc


def _choose_batch_tile(n, c, hw, itemsize, vmem_limit_bytes, num_tensorcores):
    """Per-grid-step batch tile TN for a (TN, C, HW) slab.

    VMEM accounting is tile-padding aware: the slab occupies
    ceil(C/sublane_tile)*sublane_tile x ceil(HW/128)*128 elements per batch
    row.  Per step the pipeline holds 2x(in)+2x(out) double-buffered slabs
    plus ~1 slab of elementwise temporaries, so budget ~vmem_limit/6 per slab.
    """
    sublane_tile = 8 * max(1, 4 // itemsize)        # f32: 8, bf16: 16, int8: 32
    padded_per_batch = (pl.cdiv(c, sublane_tile) * sublane_tile
                        * pl.cdiv(hw, 128) * 128 * itemsize)
    slab_budget = max(padded_per_batch, vmem_limit_bytes // 6)
    tn = max(1, min(n, slab_budget // padded_per_batch))
    steps = pl.cdiv(n, tn)

    if num_tensorcores >= 2 and n > 1:
        # Two-TensorCore part (v7x): both cores need "parallel" work, and an
        # even step count avoids one core doing ~2x the DMA.
        if steps < 2:
            steps = 2
        elif steps % 2:
            steps += 1
        tn = pl.cdiv(n, steps)
        steps = pl.cdiv(n, tn)
    # else: single-TC part (v5e/v6e) -- the grid is a serial loop; never split
    # a memory-bound workload just to add per-step overhead.

    # Prefer a tile that divides N evenly (no padded DMA / masked writeback on
    # the final step) as long as it costs at most one extra grid step.
    if n % tn:
        for cand in range(tn - 1, 0, -1):
            s = pl.cdiv(n, cand)
            if s > steps + 1:
                break
            if n % cand == 0 and (num_tensorcores < 2 or s % 2 == 0):
                tn = cand
                break
    return tn


def se_block(x_nchw, w_down, b_down, w_up, b_up, *, max_batch_tile=None):
    """x_nchw: (N, C, H, W).  1x1-conv weights as 2D matrices:
       w_down (internal, C), b_down (internal,), w_up (C, internal), b_up (C,).
       Output dtype == input dtype; pooling / convs accumulate in f32."""
    N, C, H, W = x_nchw.shape
    HW = H * W
    internal = w_down.shape[0]

    # Lane-dense layout: spatial lives on the lane axis (HW = 256 here).
    # TODO(synk): for production SE stages where HW is not a multiple of 128
    # (7x7=49, 14x14=196), switch to a channels-on-lanes (N, HW, C) layout so
    # the store path stays unmasked.
    x_flat = x_nchw.reshape(N, C, HW)

    # Pre-transpose the tiny 1x1-conv weights so in-kernel matmuls are plain
    # (TN, C) @ (C, internal) and (TN, internal) @ (internal, C).
    wd_t = w_down.astype(jnp.float32).T               # (C, internal)
    wu_t = w_up.astype(jnp.float32).T                 # (internal, C)
    bd = b_down.astype(jnp.float32).reshape(1, internal)
    bu = b_up.astype(jnp.float32).reshape(1, C)

    itemsize = jnp.dtype(x_nchw.dtype).itemsize
    vmem_phys, num_tc = _tpu_config()
    # Scoped VMEM limit: ~3/4 of physical, capped at 96 MiB (=> 48 MiB on a
    # 64 MiB v7x part, 96 MiB on 128 MiB v5e/v6e parts), never below 32 MiB.
    vmem_limit = max(32 << 20, min(96 << 20, (vmem_phys * 3) // 4))

    tn = _choose_batch_tile(N, C, HW, itemsize, vmem_limit, num_tc)
    if max_batch_tile is not None:
        tn = max(1, min(tn, int(max_batch_tile)))
    grid = (pl.cdiv(N, tn),)

    # Bound the f32 pooling temporary to ~2 MiB per sub-chunk.  For f32 inputs
    # the upcast is a no-op, so a single chunk is used.
    if itemsize >= 4:
        rows_per_chunk = tn
    else:
        rows = max(8, ((2 << 20) // max(C * HW * 4, 1)) // 8 * 8)
        rows_per_chunk = max(1, min(tn, rows))

    kernel = functools.partial(se_block_kernel, rows_per_chunk=rows_per_chunk)

    out_flat = pl.pallas_call(
        kernel,
        out_shape=jax.ShapeDtypeStruct((N, C, HW), x_nchw.dtype),
        grid_spec=pltpu.PrefetchScalarGridSpec(
            num_scalar_prefetch=0,
            grid=grid,
            in_specs=[
                pl.BlockSpec((tn, C, HW), lambda n: (n, 0, 0)),    # batch slab
                pl.BlockSpec((C, internal), lambda n: (0, 0)),     # down weight^T
                pl.BlockSpec((1, internal), lambda n: (0, 0)),     # down bias
                pl.BlockSpec((internal, C), lambda n: (0, 0)),     # up weight^T
                pl.BlockSpec((1, C), lambda n: (0, 0)),            # up bias
            ],
            out_specs=pl.BlockSpec((tn, C, HW), lambda n: (n, 0, 0)),
            scratch_shapes=[pltpu.VMEM((tn, C), jnp.float32)],     # pooled (f32)
        ),
        compiler_params=pltpu.CompilerParams(
            dimension_semantics=("parallel",),
            vmem_limit_bytes=vmem_limit,
        ),
    )(x_flat, wd_t, bd, wu_t, bu)

    return out_flat.reshape(N, C, H, W)


def se_block_reference(x, w_down, b_down, w_up, b_up):
    # Pure-JAX reference mirroring the PyTorch forward (H == W assumed).
    pooled = jnp.mean(x, axis=(2, 3))                                # (N, C)
    h = jnp.maximum(pooled @ w_down.T + b_down, 0.0)                 # (N, internal)
    e = jax.nn.sigmoid(h @ w_up.T + b_up)                            # (N, C)
    return x * e[:, :, None, None]


if __name__ == "__main__":
    # Small shapes consistent with the module: N=2, C=4, H=W=16, internal=8.
    N, C, H, W = 2, 4, 16, 16
    internal = 8

    key = jax.random.PRNGKey(0)
    k_x, k_wd, k_bd, k_wu, k_bu, k_x2 = jax.random.split(key, 6)

    x = jax.random.normal(k_x, (N, C, H, W), dtype=jnp.float32)
    w_down = jax.random.normal(k_wd, (internal, C), dtype=jnp.float32) * 0.1
    b_down = jax.random.normal(k_bd, (internal,), dtype=jnp.float32) * 0.1
    w_up = jax.random.normal(k_wu, (C, internal), dtype=jnp.float32) * 0.1
    b_up = jax.random.normal(k_bu, (C,), dtype=jnp.float32) * 0.1

    # float32 activations.
    out = jax.block_until_ready(se_block(x, w_down, b_down, w_up, b_up))
    ref = se_block_reference(x, w_down, b_down, w_up, b_up)
    assert out.shape == (N, C, H, W)
    assert jnp.allclose(out, ref, atol=1e-5, rtol=1e-5)

    # bfloat16 bulk activations (halves HBM traffic; weights/accum stay f32).
    x_bf16 = x.astype(jnp.bfloat16)
    out_bf16 = jax.block_until_ready(se_block(x_bf16, w_down, b_down, w_up, b_up))
    ref_bf16 = se_block_reference(x_bf16.astype(jnp.float32),
                                  w_down, b_down, w_up, b_up)
    assert out_bf16.dtype == jnp.bfloat16
    assert jnp.allclose(out_bf16.astype(jnp.float32), ref_bf16,
                        atol=2e-2, rtol=2e-2)

    # Multi-step grid with a ragged final block (exercises masked writeback).
    N2 = 5
    x2 = jax.random.normal(k_x2, (N2, C, H, W), dtype=jnp.float32)
    out2 = jax.block_until_ready(
        se_block(x2, w_down, b_down, w_up, b_up, max_batch_tile=2))
    ref2 = se_block_reference(x2, w_down, b_down, w_up, b_up)
    assert jnp.allclose(out2, ref2, atol=1e-5, rtol=1e-5)

    print("KERNEL_OK")
</pallas_src>

<mosaic_0001>
module attributes {stable_mosaic.version = 11 : i64} {
  func.func @se_block_kernel(%arg0: i32, %arg1: memref<2x4x256xf32, #tpu.memory_space<vmem>>, %arg2: memref<4x8xf32, #tpu.memory_space<vmem>>, %arg3: memref<1x8xf32, #tpu.memory_space<vmem>>, %arg4: memref<8x4xf32, #tpu.memory_space<vmem>>, %arg5: memref<1x4xf32, #tpu.memory_space<vmem>>, %arg6: memref<2x4x256xf32, #tpu.memory_space<vmem>>, %arg7: memref<2x4xf32, #tpu.memory_space<vmem>>) attributes {dimension_semantics = [#tpu.dimension_semantics<parallel>], iteration_bounds = array<i64: 1>, scalar_prefetch = 0 : i64, scratch_operands = 1 : i64, tpu.core_type = #tpu.core_type<tc>, window_params = [{transform_indices = @transform_0, window_bounds = array<i64: 2, 4, 256>}, {pipeline_mode = #tpu.pipeline_mode<synchronous>, transform_indices = @transform_1, window_bounds = array<i64: 4, 8>}, {pipeline_mode = #tpu.pipeline_mode<synchronous>, transform_indices = @transform_2, window_bounds = array<i64: 1, 8>}, {pipeline_mode = #tpu.pipeline_mode<synchronous>, transform_indices = @transform_3, window_bounds = array<i64: 8, 4>}, {pipeline_mode = #tpu.pipeline_mode<synchronous>, transform_indices = @transform_4, window_bounds = array<i64: 1, 4>}, {transform_indices = @transform_5, window_bounds = array<i64: 2, 4, 256>}]} {
    %c0 = arith.constant 0 : index
    %c0_0 = arith.constant 0 : index
    %c0_1 = arith.constant 0 : index
    %0 = vector.load %arg1[%c0, %c0_0, %c0_1] : memref<2x4x256xf32, #tpu.memory_space<vmem>>, vector<2x4x256xf32>
    %cst = arith.constant dense<0.000000e+00> : vector<2x4xf32>
    %1 = vector.multi_reduction <add>, %0, %cst [2] : vector<2x4x256xf32> to vector<2x4xf32>
    %cst_2 = arith.constant 3.906250e-03 : f32
    %2 = vector.broadcast %cst_2 : f32 to vector<2x4xf32>
    %3 = arith.mulf %1, %2 : vector<2x4xf32>
    %c0_3 = arith.constant 0 : index
    %c0_4 = arith.constant 0 : index
    %4 = vector.load %arg7[%c0_3, %c0_4] : memref<2x4xf32, #tpu.memory_space<vmem>>, vector<2x4xf32>
    tpu.vector_store %arg7[%c0_3, %c0_4], %3 {strides = array<i32>} : memref<2x4xf32, #tpu.memory_space<vmem>>, vector<2x4xf32>,
    %c0_5 = arith.constant 0 : index
    %c0_6 = arith.constant 0 : index
    %5 = vector.load %arg7[%c0_5, %c0_6] : memref<2x4xf32, #tpu.memory_space<vmem>>, vector<2x4xf32>
    %c0_7 = arith.constant 0 : index
    %c0_8 = arith.constant 0 : index
    %6 = vector.load %arg2[%c0_7, %c0_8] : memref<4x8xf32, #tpu.memory_space<vmem>>, vector<4x8xf32>
    %cst_9 = arith.constant dense<0.000000e+00> : vector<2x8xf32>
    %7 = tpu.matmul %5, %6, %cst_9 {dimension_numbers = #tpu.dot_dimension_numbers<[1], [0], [0], [1], [0, 0, 1, 1], [], []>} : vector<2x4xf32>, vector<4x8xf32>, vector<2x8xf32> -> vector<2x8xf32>
    %c0_10 = arith.constant 0 : index
    %c0_11 = arith.constant 0 : index
    %8 = vector.load %arg3[%c0_10, %c0_11] : memref<1x8xf32, #tpu.memory_space<vmem>>, vector<1x8xf32>
    %9 = vector.broadcast %8 : vector<1x8xf32> to vector<2x8xf32>
    %10 = arith.addf %7, %9 : vector<2x8xf32>
    %cst_12 = arith.constant 0.000000e+00 : f32
    %11 = vector.broadcast %cst_12 : f32 to vector<2x8xf32>
    %12 = arith.maximumf %10, %11 : vector<2x8xf32>
    %c0_13 = arith.constant 0 : index
    %c0_14 = arith.constant 0 : index
    %13 = vector.load %arg4[%c0_13, %c0_14] : memref<8x4xf32, #tpu.memory_space<vmem>>, vector<8x4xf32>
    %cst_15 = arith.constant dense<0.000000e+00> : vector<2x4xf32>
    %14 = tpu.matmul %12, %13, %cst_15 {dimension_numbers = #tpu.dot_dimension_numbers<[1], [0], [0], [1], [0, 0, 1, 1], [], []>} : vector<2x8xf32>, vector<8x4xf32>, vector<2x4xf32> -> vector<2x4xf32>
    %c0_16 = arith.constant 0 : index
    %c0_17 = arith.constant 0 : index
    %15 = vector.load %arg5[%c0_16, %c0_17] : memref<1x4xf32, #tpu.memory_space<vmem>>, vector<1x4xf32>
    %16 = vector.broadcast %15 : vector<1x4xf32> to vector<2x4xf32>
    %17 = arith.addf %14, %16 : vector<2x4xf32>
    %18 = arith.negf %17 : vector<2x4xf32>
    %19 = math.exp %18 : vector<2x4xf32>
    %cst_18 = arith.constant 1.000000e+00 : f32
    %20 = vector.broadcast %cst_18 : f32 to vector<2x4xf32>
    %21 = arith.addf %20, %19 : vector<2x4xf32>
    %22 = arith.divf %20, %21 : vector<2x4xf32>
    %c0_19 = arith.constant 0 : index
    %c0_20 = arith.constant 0 : index
    %c0_21 = arith.constant 0 : index
    %23 = vector.load %arg1[%c0_19, %c0_20, %c0_21] : memref<2x4x256xf32, #tpu.memory_space<vmem>>, vector<2x4x256xf32>
    %24 = vector.shape_cast %22 : vector<2x4xf32> to vector<2x4x1xf32>
    %25 = vector.broadcast %24 : vector<2x4x1xf32> to vector<2x4x256xf32>
    %26 = arith.mulf %23, %25 : vector<2x4x256xf32>
    %c0_22 = arith.constant 0 : index
    %c0_23 = arith.constant 0 : index
    %c0_24 = arith.constant 0 : index
    %27 = vector.load %arg6[%c0_22, %c0_23, %c0_24] : memref<2x4x256xf32, #tpu.memory_space<vmem>>, vector<2x4x256xf32>
    tpu.vector_store %arg6[%c0_22, %c0_23, %c0_24], %26 {strides = array<i32>} : memref<2x4x256xf32, #tpu.memory_space<vmem>>, vector<2x4x256xf32>,
    return
  }
  func.func @transform_0(%arg0: i32) -> (i32, i32, i32) {
    %c0_i32 = arith.constant 0 : i32
    %c0_i32_0 = arith.constant 0 : i32
    %c0_i32_1 = arith.constant 0 : i32
    return %arg0, %c0_i32, %c0_i32_0 : i32, i32, i32
  }
  func.func @transform_1(%arg0: i32) -> (i32, i32) {
    %c0_i32 = arith.constant 0 : i32
    %c0_i32_0 = arith.constant 0 : i32
    %c0_i32_1 = arith.constant 0 : i32
    return %c0_i32, %c0_i32_0 : i32, i32
  }
  func.func @transform_2(%arg0: i32) -> (i32, i32) {
    %c0_i32 = arith.constant 0 : i32
    %c0_i32_0 = arith.constant 0 : i32
    %c0_i32_1 = arith.constant 0 : i32
    return %c0_i32, %c0_i32_0 : i32, i32
  }
  func.func @transform_3(%arg0: i32) -> (i32, i32) {
    %c0_i32 = arith.constant 0 : i32
    %c0_i32_0 = arith.constant 0 : i32
    %c0_i32_1 = arith.constant 0 : i32
    return %c0_i32, %c0_i32_0 : i32, i32
  }
  func.func @transform_4(%arg0: i32) -> (i32, i32) {
    %c0_i32 = arith.constant 0 : i32
    %c0_i32_0 = arith.constant 0 : i32
    %c0_i32_1 = arith.constant 0 : i32
    return %c0_i32, %c0_i32_0 : i32, i32
  }
  func.func @transform_5(%arg0: i32) -> (i32, i32, i32) {
    %c0_i32 = arith.constant 0 : i32
    %c0_i32_0 = arith.constant 0 : i32
    %c0_i32_1 = arith.constant 0 : i32
    return %arg0, %c0_i32, %c0_i32_0 : i32, i32, i32
  }
}

</mosaic_0001>

<llo_original>
// kernel: tpu_custom_call.1
$region0: #{tpu_custom_call.1}
  #allocation0 [shape = 'u32[]', space=smem, size = 0x4, offset = 0x4, fixed_abs, tag = 'smem constant byte address 0x4 - core index']
  #allocation1 [shape = 'u32[72,128]{1,0:T(1,128)}', space=vmem, size = 0x9000, scoped, tag = 'internal scratch']
  #allocation2 [shape = 'f32[2,4]{1,0:T(2,128)}', space=vmem, size = 0x400, scoped, tag = 'scratch operand']
  %s0 = inlined_call_operand.hbm [shape: f32[2,4,256], index: 0, kind: input, shape index: {}]
  %s1 = inlined_call_operand.vmem [shape: f32[4,8], index: 1, kind: input, shape index: {}]
  %s2 = inlined_call_operand.vmem [shape: f32[1,8], index: 2, kind: input, shape index: {}]
  %s3 = inlined_call_operand.vmem [shape: f32[8,4], index: 3, kind: input, shape index: {}]
  %s4 = inlined_call_operand.vmem [shape: f32[1,4], index: 4, kind: input, shape index: {}]
  %s5 = inlined_call_operand.hbm [shape: f32[2,4,256], index: 5, kind: output, shape index: {}]
  %s6 = sld [smem:[#allocation0]]
  $region34: #{tpu_custom_call.1} parent=0
    _
  %s8 = ssub.s32 1, %s6
  %s9 = scalar_select 0, %s8, %s6
  $region1: #{tpu_custom_call.1} parent=0
    #allocation3 [shape = 'u8[8192]{0}', space=vmem, size = 0x2000, scoped, tag = 'input window, operand 0, single buffered']
    #allocation4 [shape = 's32[1]{0}', space=sflag, size = 0x4, scoped, tag = 'scoped memory for tpu_custom_call.1']
    #allocation5 [shape = 's32[1]{0}', space=sflag, size = 0x4, scoped, tag = 'scoped memory for tpu_custom_call.1']
    #allocation6 [shape = 'u8[8192]{0}', space=vmem, size = 0x2000, scoped, tag = 'output window, operand 0, single buffered']
    %10 = vsyncpa [#allocation4], 0
    %11 = vsyncpa [#allocation5], 0
    // Predicated region
    $region2: #{tpu_custom_call.1} parent=1 // pred_check
      _
    $region3: #{tpu_custom_call.1} parent=1 // pred_check_branch
      %13 = sbr.rel (0) target = $region5
    $region4: #{tpu_custom_call.1} parent=1 // pred_region
      %15 = vsyncadd [#allocation4], 0
      %s16 = sshll.u32 %s0, 4
      %s17 = int_to_ptr.hbm [resolvable:$true] %s16
      %s18 = sshll.u32 [#allocation3], 4
      %s19 = int_to_ptr.vmem [resolvable:$true] %s18
      %24 = dma.hbm_to_vmem [thread:$0]  %s17, 256, %s19, [#allocation4], 128, 128, 8
    $region5: #{tpu_custom_call.1} parent=1 // pred_fallthru
      _
    // Predicated region
    $region6: #{tpu_custom_call.1} parent=1 // pred_check
      _
    $region7: #{tpu_custom_call.1} parent=1 // pred_check_branch
      %26 = sbr.rel (0) target = $region9
    $region8: #{tpu_custom_call.1} parent=1 // pred_region
      _
    $region9: #{tpu_custom_call.1} parent=1 // pred_fallthru
      _
    // Predicated region
    $region10: #{tpu_custom_call.1} parent=1 // pred_check
      _
    $region11: #{tpu_custom_call.1} parent=1 // pred_check_branch
      %28 = sbr.rel (0) target = $region13
    $region12: #{tpu_custom_call.1} parent=1 // pred_region
      _
    $region13: #{tpu_custom_call.1} parent=1 // pred_fallthru
      _
    // Predicated region
    $region14: #{tpu_custom_call.1} parent=1 // pred_check
      _
    $region15: #{tpu_custom_call.1} parent=1 // pred_check_branch
      %30 = sbr.rel (0) target = $region17
    $region16: #{tpu_custom_call.1} parent=1 // pred_region
      _
    $region17: #{tpu_custom_call.1} parent=1 // pred_fallthru
      _
    // Predicated region
    $region18: #{tpu_custom_call.1} parent=1 // pred_check
      _
    $region19: #{tpu_custom_call.1} parent=1 // pred_check_branch
      %32 = sbr.rel (0) target = $region21
    $region20: #{tpu_custom_call.1} parent=1 // pred_region
      _
    $region21: #{tpu_custom_call.1} parent=1 // pred_fallthru
      _
    // Predicated region
    $region22: #{tpu_custom_call.1} parent=1 // pred_check
      _
    $region23: #{tpu_custom_call.1} parent=1 // pred_check_branch
      %34 = sbr.rel (0) target = $region25
    $region24: #{tpu_custom_call.1} parent=1 // pred_region
      %36 = dma.done [#allocation4], 256
    $region25: #{tpu_custom_call.1} parent=1 // pred_fallthru
      _
    %v37 = vld [vmem:[#allocation3] sm:$0xff]
    %v38 = vld [vmem:[#allocation3 + $0x8] sm:$0xff]
    %41 = vst [vmem:[#allocation1] ss:$2 sm:$0xff] %v37
    %v42 = vld.sshfl [vmem:[#allocation1] sm:$0xff pattern:$0x75316420]
    %v43 = vld.sshfl [vmem:[#allocation1 + $0x8] sm:$0xff pattern:$0x75316420]
    %s44 = scalar_lea.vmem [#allocation1], 16
    %45 = vst [vmem:[%s44] ss:$2 sm:$0xff] %v38
    %v46 = vld.sshfl [vmem:[#allocation1 + $0x10] sm:$0xff pattern:$0x75316420]
    %v47 = vld.sshfl [vmem:[#allocation1 + $0x18] sm:$0xff pattern:$0x75316420]
    %vm52 = vcmask 1043456
    %v53 = vsel %vm52, %v42, 0.0
    %v54 = vsel %vm52, %v43, 0.0
    %v55 = vadd.f32 %v53, %v54
    %56 = vadd.xlane.f32.xlu0 %v55
    %v57 = vpop.xlane.xlu0 %56
    %v58 = vsel %vm52, %v46, 0.0
    %v59 = vsel %vm52, %v47, 0.0
    %v60 = vadd.f32 %v58, %v59
    %61 = vadd.xlane.f32.xlu0 %v60
    %v62 = vpop.xlane.xlu0 %61
    %v63 = vmul.f32 %v57, 0.00390625
    %v64 = vmul.f32 %v62, 0.00390625
    %v67 = vlaneseq
    %v68 = vand.u32 %v67, 127
    %v69 = vperm.slane %v63, %v68
    %v70 = vperm.slane %v64, %v68
    %vm71 = vcmask 1041409
    %v72 = vsel %vm71, %v70, %v69
    %vm74 = vcmask 25600
    %75 = vst.msk [vmem:[#allocation2] sm:$0x3] %vm74, %v72
    %v76 = vld [vmem:[#allocation2] sm:$0x3]
    %v77 = vld [vmem:[%s1] sm:$0xf]
    %v78 = vld [vmem:[%s2] sm:$0x1]
    %v80 = vperm.slane %v78, 0
    %vm82 = vcmask 31744
    %v84 = vsel %vm82, %v76, 0
    %v87 = vsel %vm52, %v77, 0
    %89 = vmatpush.msra.mxu0 0.0
    %90 = vmatpush.msra.mxu0 0.0
    %91 = vmatpush.msra.mxu0 0.0
    %92 = vmatpush.msra.mxu0 0.0
    %93 = vmatpush.msra.mxu0 0.0
    %94 = vmatpush.msra.mxu0 0.0
    %95 = vmatpush.msra.mxu0 0.0
    %96 = vmatpush.msra.mxu0 0.0
    %97 = vmatpush.msra.mxu0 0.0
    %98 = vmatpush.msra.mxu0 0.0
    %99 = vmatpush.msra.mxu0 0.0
    %100 = vmatpush.msra.mxu0 0.0
    %101 = vmatpush.msra.mxu0 0.0
    %102 = vmatpush.msra.mxu0 0.0
    %103 = vmatpush.msra.mxu0 0.0
    %104 = vmatpush.msra.mxu0 %v87
    %105 = vmatmul.f32.gmra.mxu0 %v84
    %v106 = vpop.f32.mrf.mxu0
    %v107 = vadd.f32 %v80, %v106
    %108 = vdwg.mxu0
    %v109 = vmax.f32 %v107, 0.0
    %v110 = vld [vmem:[%s3] sm:$0xff]
    %v111 = vld [vmem:[%s4] sm:$0x1]
    %v113 = vperm.slane %v111, 0
    %vm115 = vcmask 64512
    %v117 = vsel %vm115, %v109, 0
    %119 = vmatpush.msra.mxu0 0.0
    %120 = vmatpush.msra.mxu0 0.0
    %121 = vmatpush.msra.mxu0 0.0
    %122 = vmatpush.msra.mxu0 0.0
    %123 = vmatpush.msra.mxu0 0.0
    %124 = vmatpush.msra.mxu0 0.0
    %125 = vmatpush.msra.mxu0 0.0
    %126 = vmatpush.msra.mxu0 0.0
    %127 = vmatpush.msra.mxu0 0.0
    %128 = vmatpush.msra.mxu0 0.0
    %129 = vmatpush.msra.mxu0 0.0
    %130 = vmatpush.msra.mxu0 0.0
    %131 = vmatpush.msra.mxu0 0.0
    %132 = vmatpush.msra.mxu0 0.0
    %133 = vmatpush.msra.mxu0 0.0
    %134 = vmatpush.msra.mxu0 %v110
    %135 = vmatmul.f32.gmra.mxu0 %v117
    %v136 = vpop.f32.mrf.mxu0
    %v137 = vadd.f32 %v113, %v136
    %138 = vdwg.mxu0
    %v139 = vxor.u32 %v137, 2147483648
    %v140 = vmul.f32 %v139, 1.442695
    %v141 = vpow.pop %v140
    %v142 = vadd.f32 %v141, 1.0
    %v143 = vrcp.pop %v142
    %v144 = vmul.f32 %v142, %v143
    %v145 = vsub.f32 1.0, %v144
    %v146 = vmul.f32 %v143, %v145
    %v147 = vadd.f32 %v143, %v146
    %vm148 = vweird.f32 %v142
    %vm149 = vweird.f32 %v143
    %vm150 = vmor %vm148, %vm149
    %v151 = vsel %vm150, %v143, %v147
    %v152 = vand.u32 2147483647, %v142
    %vm153 = vcmp.eq.f32.partialorder %v152, 8.507059e+37
    %v154 = vand.u32 %v142, 2147483648
    %v155 = vor.u32 1.1754944e-38, %v154
    %v156 = vsel %vm153, %v155, %v151
    %v157 = vmul.f32 1.0, %v156
    %v158 = vld [vmem:[#allocation3] sm:$0xff]
    %v159 = vld [vmem:[#allocation3 + $0x8] sm:$0xff]
    %v160 = vperm.slane %v157, 0
    %v161 = vlaneseq
    %v162 = vshrl.u32 %v161, 7
    %164 = vset.pattern.permute.xlu0 %v162
    %165 = vperm.xlu0 %164, %v160
    %v166 = vpop.permute.xlu0 %165
    %v167 = vperm.slane %v157, 1
    %v168 = vlaneseq
    %v169 = vshrl.u32 %v168, 7
    %171 = vset.pattern.permute.xlu0 %v169
    %172 = vperm.xlu0 %171, %v167
    %v173 = vpop.permute.xlu0 %172
    %v177 = vunpack.c.l.s4 839922192
    %v178 = vunpack.c.0.s8 %v177
    %v179 = vperm.slane %v166, %v178
    %v181 = vunpack.c.l.s4 839922192
    %v182 = vunpack.c.0.s8 %v181
    %v183 = vperm.slane %v173, %v182
    %v186 = vmul.f32 %v158, %v179
    %v187 = vmul.f32 %v159, %v183
    %188 = vst [vmem:[#allocation6] sm:$0xff] %v186
    %189 = vst [vmem:[#allocation6 + $0x8] sm:$0xff] %v187
    // Predicated region
    $region26: #{tpu_custom_call.1} parent=1 // pred_check
      _
    $region27: #{tpu_custom_call.1} parent=1 // pred_check_branch
      %191 = sbr.rel (0) target = $region29
    $region28: #{tpu_custom_call.1} parent=1 // pred_region
      %193 = vsyncadd [#allocation5], 0
      %s194 = sshll.u32 [#allocation6], 4
      %s195 = int_to_ptr.vmem [resolvable:$true] %s194
      %s196 = sshll.u32 %s5, 4
      %s197 = int_to_ptr.hbm [resolvable:$true] %s196
      %202 = dma.vmem_to_hbm [thread:$0]  %s195, 256, %s197, [#allocation5], 128, 128, 8
    $region29: #{tpu_custom_call.1} parent=1 // pred_fallthru
      _
    // Predicated region
    $region30: #{tpu_custom_call.1} parent=1 // pred_check
      _
    $region31: #{tpu_custom_call.1} parent=1 // pred_check_branch
      %204 = sbr.rel (0) target = $region33
    $region32: #{tpu_custom_call.1} parent=1 // pred_region
      %206 = dma.done [#allocation5], 256
    $region33: #{tpu_custom_call.1} parent=1 // pred_fallthru
      _
    %207 = vsyncpa [#allocation4], 1
    %208 = vsyncpa [#allocation5], 1

</llo_original>
